<compile_context>
chip_gen: v6e
topology: v6e:2x2x1
jax: 0.10.0
libtpu: 0.0.40
codegen_flags: <defaults>
</compile_context>

<pallas_src>
import functools

import jax
import jax.numpy as jnp
from jax.experimental import pallas as pl
from jax.experimental.pallas import tpu as pltpu


def _round_up(v, m):
    return (v + m - 1) // m * m


def fused_gin_kernel(x_ref, a_ref, w_in1_ref, w_in2_ref, w_ref, b_ref, o_ref, h_ref, *, eps):
    """One grid step == one MLPBlock GIN layer; step 0 also runs gin_conv_in.

    x_ref, a_ref, w_in1_ref, w_in2_ref are VMEM-resident across all steps (constant
    index_map); w_ref/b_ref stream one layer's parameters per step; h_ref is the f32
    activation carry.
    """
    l = pl.program_id(0)
    num_mlp = pl.num_programs(0)
    a = a_ref[...]  # bf16 adjacency, resident in VMEM across the whole grid

    # ---- grid step 0: gin_conv_in = GINConv(Sequential(Linear, ReLU, Linear)) + outer ReLU ----
    @pl.when(l == 0)
    def _():
        x = x_ref[...]  # f32
        agg = jnp.dot(a, x.astype(jnp.bfloat16), preferred_element_type=jnp.float32)
        h0 = ((1.0 + eps) * x + agg) if eps != 0.0 else (x + agg)
        # No ReLU before W_in1: GINConv applies the Sequential directly to (1+eps)x + agg.
        h0 = jnp.maximum(
            jnp.dot(h0.astype(jnp.bfloat16), w_in1_ref[...], preferred_element_type=jnp.float32),
            0.0)
        h0 = jnp.dot(h0.astype(jnp.bfloat16), w_in2_ref[...], preferred_element_type=jnp.float32)
        h_ref[...] = jnp.maximum(h0, 0.0)  # encoder-level F.relu after gin_conv_in

    # ---- every step: one MLPBlock GIN layer (hidden gins, last step == gin_conv_out) ----
    h = h_ref[...]
    agg = jnp.dot(a, h.astype(jnp.bfloat16), preferred_element_type=jnp.float32)
    h = ((1.0 + eps) * h + agg) if eps != 0.0 else (h + agg)
    h = jnp.maximum(h, 0.0)  # MLPBlock ReLU (transform1/norms are dead code)
    h = jnp.dot(h.astype(jnp.bfloat16), w_ref[0], preferred_element_type=jnp.float32) + b_ref[0]
    # Encoder-level F.relu for hidden layers only; gin_conv_out has no outer ReLU.
    h = jnp.where(l < num_mlp - 1, jnp.maximum(h, 0.0), h)
    h_ref[...] = h

    @pl.when(l == num_mlp - 1)
    def _():
        o_ref[...] = h_ref[...].astype(o_ref.dtype)


def fused_gin_forward(x_p, adj_p, w_in1_p, w_in2_p, mlp_w_p, mlp_b_p, *, eps=0.0):
    """Single pallas_call: layer grid axis streams per-layer MLP weights, h stays in VMEM."""
    n_p, d_in_p = x_p.shape
    d_p = w_in1_p.shape[1]
    num_mlp = mlp_w_p.shape[0]  # hidden_layers + 1 (gin_conv_out)
    kernel = functools.partial(fused_gin_kernel, eps=eps)
    return pl.pallas_call(
        kernel,
        out_shape=jax.ShapeDtypeStruct((n_p, d_p), jnp.float32),
        grid=(num_mlp,),
        in_specs=[
            pl.BlockSpec((n_p, d_in_p), lambda l: (0, 0)),      # x (used at l==0, resident)
            pl.BlockSpec((n_p, n_p), lambda l: (0, 0)),         # bf16 adjacency (resident)
            pl.BlockSpec((d_in_p, d_p), lambda l: (0, 0)),      # W_in1 (resident)
            pl.BlockSpec((d_p, d_p), lambda l: (0, 0)),         # W_in2 (resident)
            pl.BlockSpec((1, d_p, d_p), lambda l: (l, 0, 0)),   # streamed per-layer MLP weight
            pl.BlockSpec((1, 1, d_p), lambda l: (l, 0, 0)),     # streamed per-layer MLP bias
        ],
        out_specs=pl.BlockSpec((n_p, d_p), lambda l: (0, 0)),
        scratch_shapes=[pltpu.VMEM((n_p, d_p), jnp.float32)],   # h carry across layers
        compiler_params=pltpu.CompilerParams(
            dimension_semantics=("arbitrary",),  # layer axis is a sequential carry
            # 48 MiB: leaves headroom on v7x (64 MiB physical per TC); v5e/v6e (128 MiB)
            # can be raised toward ~96 MiB for larger graphs.
            vmem_limit_bytes=48 * 1024 * 1024,
        ),
    )(x_p, adj_p, w_in1_p, w_in2_p, mlp_w_p, mlp_b_p)


def init_params(key, num_in, nn_dim, hidden_layers):
    """Synthetic parameters matching the module's shapes ([in, out] layout so x @ W)."""
    keys = jax.random.split(key, 4 + 2 * hidden_layers)
    params = {}
    # gin_conv_in: Linear(num_in, nn_dim, bias=False), Linear(nn_dim, nn_dim, bias=False)
    params["w_in1"] = jax.random.normal(keys[0], (num_in, nn_dim), jnp.float32) * 0.1
    params["w_in2"] = jax.random.normal(keys[1], (nn_dim, nn_dim), jnp.float32) * 0.1
    # hidden MLPBlocks: only transform2 (std=0.005 weight + bias) is live in forward.
    params["hidden"] = []
    for i in range(hidden_layers):
        w = jax.random.normal(keys[2 + 2 * i], (nn_dim, nn_dim), jnp.float32) * 0.005
        b = jax.random.normal(keys[3 + 2 * i], (1, nn_dim), jnp.float32) * 0.01
        params["hidden"].append((w, b))
    # gin_conv_out: MLPBlock transform2 weight/bias
    params["w_out2"] = (
        jax.random.normal(keys[2 + 2 * hidden_layers], (nn_dim, nn_dim), jnp.float32) * 0.005
    )
    params["b_out2"] = (
        jax.random.normal(keys[3 + 2 * hidden_layers], (1, nn_dim), jnp.float32) * 0.01
    )
    return params


def prepare_params(params, *, num_in, nn_dim):
    """Pad + stack parameters ONCE (hoisted out of the per-forward hot path).

    Weights stored bf16 (MXU operands); biases stay f32 (VPU adds)."""
    d_in_p = _round_up(num_in, 128)
    d_p = _round_up(nn_dim, 128)

    def pad2(w, rows, cols):
        return jnp.pad(w, ((0, rows - w.shape[0]), (0, cols - w.shape[1])))

    w_in1 = pad2(params["w_in1"], d_in_p, d_p).astype(jnp.bfloat16)
    w_in2 = pad2(params["w_in2"], d_p, d_p).astype(jnp.bfloat16)
    ws = [w for (w, _) in params["hidden"]] + [params["w_out2"]]
    bs = [b for (_, b) in params["hidden"]] + [params["b_out2"]]
    mlp_w = jnp.stack([pad2(w, d_p, d_p) for w in ws]).astype(jnp.bfloat16)
    mlp_b = jnp.stack([pad2(b, 1, d_p) for b in bs]).astype(jnp.float32)
    return {"w_in1": w_in1, "w_in2": w_in2, "mlp_w": mlp_w, "mlp_b": mlp_b, "nn_dim": nn_dim}


@functools.partial(jax.jit, static_argnames=("nn_dim",))
def _encoder_forward(x, edge_index, w_in1_p, w_in2_p, mlp_w_p, mlp_b_p, *, nn_dim):
    num_nodes, num_in = x.shape
    d_in_p = w_in1_p.shape[0]
    n_p = _round_up(num_nodes, 16)  # bf16 sublane packing (16, 128)

    # Dense adjacency built directly at padded size: A[row, col] += 1 per edge,
    # self-loops removed (== remove_self_loops + scatter_add). Padded rows/cols stay 0,
    # so padded nodes never contribute to real outputs (real rows sliced out below).
    row, col = edge_index[0], edge_index[1]
    edge_w = (row != col).astype(jnp.float32)
    adj = jnp.zeros((n_p, n_p), jnp.float32).at[row, col].add(edge_w)
    adj = adj.astype(jnp.bfloat16)  # small integer counts: exact in bf16

    x_p = jnp.zeros((n_p, d_in_p), jnp.float32).at[:num_nodes, :num_in].set(x)

    out_p = fused_gin_forward(x_p, adj, w_in1_p, w_in2_p, mlp_w_p, mlp_b_p, eps=0.0)
    return out_p[:num_nodes, :nn_dim]


def graph_isomorphism_encoder_forward(prepared, x, edge_index):
    return _encoder_forward(
        x, edge_index,
        prepared["w_in1"], prepared["w_in2"], prepared["mlp_w"], prepared["mlp_b"],
        nn_dim=prepared["nn_dim"],
    )


def reference_forward(params, x, edge_index, *, eps=0.0):
    """Pure-JAX f32 reference mirroring the PyTorch module's forward."""
    n = x.shape[0]
    row, col = edge_index[0], edge_index[1]
    edge_w = (row != col).astype(jnp.float32)
    a = jnp.zeros((n, n), jnp.float32).at[row, col].add(edge_w)

    h = (1.0 + eps) * x + a @ x
    h = jnp.maximum(jnp.maximum(h @ params["w_in1"], 0.0) @ params["w_in2"], 0.0)
    ws = [w for (w, _) in params["hidden"]] + [params["w_out2"]]
    bs = [b for (_, b) in params["hidden"]] + [params["b_out2"]]
    for i, (wi, bi) in enumerate(zip(ws, bs)):
        g = (1.0 + eps) * h + a @ h
        g = jnp.maximum(g, 0.0) @ wi + bi
        h = jnp.maximum(g, 0.0) if i < len(ws) - 1 else g
    return h


if __name__ == "__main__":
    key = jax.random.PRNGKey(0)
    k_x, k_edges, k_params = jax.random.split(key, 3)

    # Small graph: 16 nodes, 8 input features, nn_dim=32, 1 hidden layer.
    num_nodes = 16
    num_in = 8
    nn_dim = 32
    hidden_layers = 1
    num_edges = 40

    x = jax.random.normal(k_x, (num_nodes, num_in), jnp.float32)
    # Random edge_index [2, E]; may include self-loops (removed inside forward).
    edge_index = jax.random.randint(k_edges, (2, num_edges), 0, num_nodes, jnp.int32)

    params = init_params(k_params, num_in, nn_dim, hidden_layers)
    prepared = prepare_params(params, num_in=num_in, nn_dim=nn_dim)  # padded once, off hot path

    out = graph_isomorphism_encoder_forward(prepared, x, edge_index)
    out = jax.block_until_ready(out)

    assert out.shape == (num_nodes, nn_dim)
    assert jnp.all(jnp.isfinite(out))
    ref = reference_forward(params, x, edge_index)
    max_err = float(jnp.max(jnp.abs(out - ref)))
    assert max_err < 5e-2, f"max abs err {max_err}"
    print("KERNEL_OK")
</pallas_src>

<mosaic_0001>
module attributes {stable_mosaic.version = 11 : i64} {
  func.func private @main(%arg0: i32) attributes {dimension_semantics = [#tpu.dimension_semantics<core_parallel>], iteration_bounds = array<i64: 2>, tpu.core_type = #tpu.core_type<sc_scalar_subcore>, window_params = []} {
    return
  }
}

module attributes {stable_mosaic.version = 11 : i64} {
  func.func private @main(%arg0: i32) attributes {dimension_semantics = [#tpu.dimension_semantics<core_parallel>], iteration_bounds = array<i64: 2>, tpu.core_type = #tpu.core_type<sc_scalar_subcore>, window_params = []} {
    return
  }
}

module attributes {stable_mosaic.version = 11 : i64} {
  func.func @fused_gin_kernel(%arg0: i32, %arg1: memref<16x128xf32, #tpu.memory_space<vmem>>, %arg2: memref<16x16xbf16, #tpu.memory_space<vmem>>, %arg3: memref<128x128xbf16, #tpu.memory_space<vmem>>, %arg4: memref<128x128xbf16, #tpu.memory_space<vmem>>, %arg5: memref<1x128x128xbf16, #tpu.memory_space<vmem>>, %arg6: memref<1x1x128xf32, #tpu.memory_space<vmem>>, %arg7: memref<16x128xf32, #tpu.memory_space<vmem>>, %arg8: memref<16x128xf32, #tpu.memory_space<vmem>>) attributes {dimension_semantics = [#tpu.dimension_semantics<arbitrary>], iteration_bounds = array<i64: 2>, scalar_prefetch = 0 : i64, scratch_operands = 1 : i64, tpu.core_type = #tpu.core_type<tc>, window_params = [{pipeline_mode = #tpu.pipeline_mode<synchronous>, transform_indices = @transform_0, window_bounds = array<i64: 16, 128>}, {pipeline_mode = #tpu.pipeline_mode<synchronous>, transform_indices = @transform_1, window_bounds = array<i64: 16, 16>}, {pipeline_mode = #tpu.pipeline_mode<synchronous>, transform_indices = @transform_2, window_bounds = array<i64: 128, 128>}, {pipeline_mode = #tpu.pipeline_mode<synchronous>, transform_indices = @transform_3, window_bounds = array<i64: 128, 128>}, {transform_indices = @transform_4, window_bounds = array<i64: 1, 128, 128>}, {transform_indices = @transform_5, window_bounds = array<i64: 1, 1, 128>}, {pipeline_mode = #tpu.pipeline_mode<synchronous>, transform_indices = @transform_6, window_bounds = array<i64: 16, 128>}]} {
    %c0 = arith.constant 0 : index
    %c0_0 = arith.constant 0 : index
    %0 = vector.load %arg2[%c0, %c0_0] : memref<16x16xbf16, #tpu.memory_space<vmem>>, vector<16x16xbf16>
    %c0_i32 = arith.constant 0 : i32
    %1 = arith.cmpi eq, %arg0, %c0_i32 : i32
    %2 = arith.extui %1 : i1 to i32
    %c0_i32_1 = arith.constant 0 : i32
    %3 = arith.cmpi ne, %2, %c0_i32_1 : i32
    scf.if %3 {
      %c0_17 = arith.constant 0 : index
      %c0_18 = arith.constant 0 : index
      %26 = vector.load %arg1[%c0_17, %c0_18] : memref<16x128xf32, #tpu.memory_space<vmem>>, vector<16x128xf32>
      %27 = arith.truncf %26 : vector<16x128xf32> to vector<16x128xbf16>
      %cst_19 = arith.constant dense<0.000000e+00> : vector<16x128xf32>
      %28 = tpu.matmul %0, %27, %cst_19 {dimension_numbers = #tpu.dot_dimension_numbers<[1], [0], [0], [1], [0, 0, 1, 1], [], []>} : vector<16x16xbf16>, vector<16x128xbf16>, vector<16x128xf32> -> vector<16x128xf32>
      %29 = arith.addf %26, %28 : vector<16x128xf32>
      %30 = arith.truncf %29 : vector<16x128xf32> to vector<16x128xbf16>
      %c0_20 = arith.constant 0 : index
      %c0_21 = arith.constant 0 : index
      %31 = vector.load %arg3[%c0_20, %c0_21] : memref<128x128xbf16, #tpu.memory_space<vmem>>, vector<128x128xbf16>
      %cst_22 = arith.constant dense<0.000000e+00> : vector<16x128xf32>
      %32 = tpu.matmul %30, %31, %cst_22 {dimension_numbers = #tpu.dot_dimension_numbers<[1], [0], [0], [1], [0, 0, 1, 1], [], []>} : vector<16x128xbf16>, vector<128x128xbf16>, vector<16x128xf32> -> vector<16x128xf32>
      %cst_23 = arith.constant 0.000000e+00 : f32
      %33 = vector.broadcast %cst_23 : f32 to vector<16x128xf32>
      %34 = arith.maximumf %32, %33 : vector<16x128xf32>
      %35 = arith.truncf %34 : vector<16x128xf32> to vector<16x128xbf16>
      %c0_24 = arith.constant 0 : index
      %c0_25 = arith.constant 0 : index
      %36 = vector.load %arg4[%c0_24, %c0_25] : memref<128x128xbf16, #tpu.memory_space<vmem>>, vector<128x128xbf16>
      %cst_26 = arith.constant dense<0.000000e+00> : vector<16x128xf32>
      %37 = tpu.matmul %35, %36, %cst_26 {dimension_numbers = #tpu.dot_dimension_numbers<[1], [0], [0], [1], [0, 0, 1, 1], [], []>} : vector<16x128xbf16>, vector<128x128xbf16>, vector<16x128xf32> -> vector<16x128xf32>
      %cst_27 = arith.constant 0.000000e+00 : f32
      %38 = vector.broadcast %cst_27 : f32 to vector<16x128xf32>
      %39 = arith.maximumf %37, %38 : vector<16x128xf32>
      %c0_28 = arith.constant 0 : index
      %c0_29 = arith.constant 0 : index
      %40 = vector.load %arg8[%c0_28, %c0_29] : memref<16x128xf32, #tpu.memory_space<vmem>>, vector<16x128xf32>
      tpu.vector_store %arg8[%c0_28, %c0_29], %39 {strides = array<i32>} : memref<16x128xf32, #tpu.memory_space<vmem>>, vector<16x128xf32>,
    } else {
    }
    %c0_2 = arith.constant 0 : index
    %c0_3 = arith.constant 0 : index
    %4 = vector.load %arg8[%c0_2, %c0_3] : memref<16x128xf32, #tpu.memory_space<vmem>>, vector<16x128xf32>
    %5 = arith.truncf %4 : vector<16x128xf32> to vector<16x128xbf16>
    %cst = arith.constant dense<0.000000e+00> : vector<16x128xf32>
    %6 = tpu.matmul %0, %5, %cst {dimension_numbers = #tpu.dot_dimension_numbers<[1], [0], [0], [1], [0, 0, 1, 1], [], []>} : vector<16x16xbf16>, vector<16x128xbf16>, vector<16x128xf32> -> vector<16x128xf32>
    %7 = arith.addf %4, %6 : vector<16x128xf32>
    %cst_4 = arith.constant 0.000000e+00 : f32
    %8 = vector.broadcast %cst_4 : f32 to vector<16x128xf32>
    %9 = arith.maximumf %7, %8 : vector<16x128xf32>
    %10 = arith.truncf %9 : vector<16x128xf32> to vector<16x128xbf16>
    %c0_5 = arith.constant 0 : index
    %c0_6 = arith.constant 0 : index
    %c0_7 = arith.constant 0 : index
    %11 = vector.load %arg5[%c0_5, %c0_6, %c0_7] : memref<1x128x128xbf16, #tpu.memory_space<vmem>>, vector<1x128x128xbf16>
    %12 = vector.shape_cast %11 : vector<1x128x128xbf16> to vector<128x128xbf16>
    %cst_8 = arith.constant dense<0.000000e+00> : vector<16x128xf32>
    %13 = tpu.matmul %10, %12, %cst_8 {dimension_numbers = #tpu.dot_dimension_numbers<[1], [0], [0], [1], [0, 0, 1, 1], [], []>} : vector<16x128xbf16>, vector<128x128xbf16>, vector<16x128xf32> -> vector<16x128xf32>
    %c0_9 = arith.constant 0 : index
    %c0_10 = arith.constant 0 : index
    %c0_11 = arith.constant 0 : index
    %14 = vector.load %arg6[%c0_9, %c0_10, %c0_11] : memref<1x1x128xf32, #tpu.memory_space<vmem>>, vector<1x1x128xf32>
    %15 = vector.shape_cast %14 : vector<1x1x128xf32> to vector<1x128xf32>
    %16 = vector.broadcast %15 : vector<1x128xf32> to vector<16x128xf32>
    %17 = arith.addf %13, %16 : vector<16x128xf32>
    %c1_i32 = arith.constant 1 : i32
    %18 = arith.cmpi slt, %arg0, %c1_i32 : i32
    %cst_12 = arith.constant 0.000000e+00 : f32
    %19 = vector.broadcast %cst_12 : f32 to vector<16x128xf32>
    %20 = arith.maximumf %17, %19 : vector<16x128xf32>
    %21 = arith.select %18, %20, %17 : vector<16x128xf32>
    %c0_13 = arith.constant 0 : index
    %c0_14 = arith.constant 0 : index
    %22 = vector.load %arg8[%c0_13, %c0_14] : memref<16x128xf32, #tpu.memory_space<vmem>>, vector<16x128xf32>
    tpu.vector_store %arg8[%c0_13, %c0_14], %21 {strides = array<i32>} : memref<16x128xf32, #tpu.memory_space<vmem>>, vector<16x128xf32>,
    %c1_i32_15 = arith.constant 1 : i32
    %23 = arith.cmpi eq, %arg0, %c1_i32_15 : i32
    %24 = arith.extui %23 : i1 to i32
    %c0_i32_16 = arith.constant 0 : i32
    %25 = arith.cmpi ne, %24, %c0_i32_16 : i32
    scf.if %25 {
      %c0_17 = arith.constant 0 : index
      %c0_18 = arith.constant 0 : index
      %26 = vector.load %arg8[%c0_17, %c0_18] : memref<16x128xf32, #tpu.memory_space<vmem>>, vector<16x128xf32>
      %c0_19 = arith.constant 0 : index
      %c0_20 = arith.constant 0 : index
      %27 = vector.load %arg7[%c0_19, %c0_20] : memref<16x128xf32, #tpu.memory_space<vmem>>, vector<16x128xf32>
      tpu.vector_store %arg7[%c0_19, %c0_20], %26 {strides = array<i32>} : memref<16x128xf32, #tpu.memory_space<vmem>>, vector<16x128xf32>,
    } else {
    }
    return
  }
  func.func @transform_0(%arg0: i32) -> (i32, i32) {
    %c0_i32 = arith.constant 0 : i32
    %c0_i32_0 = arith.constant 0 : i32
    %c0_i32_1 = arith.constant 0 : i32
    return %c0_i32, %c0_i32_0 : i32, i32
  }
  func.func @transform_1(%arg0: i32) -> (i32, i32) {
    %c0_i32 = arith.constant 0 : i32
    %c0_i32_0 = arith.constant 0 : i32
    %c0_i32_1 = arith.constant 0 : i32
    return %c0_i32, %c0_i32_0 : i32, i32
  }
  func.func @transform_2(%arg0: i32) -> (i32, i32) {
    %c0_i32 = arith.constant 0 : i32
    %c0_i32_0 = arith.constant 0 : i32
    %c0_i32_1 = arith.constant 0 : i32
    return %c0_i32, %c0_i32_0 : i32, i32
  }
  func.func @transform_3(%arg0: i32) -> (i32, i32) {
    %c0_i32 = arith.constant 0 : i32
    %c0_i32_0 = arith.constant 0 : i32
    %c0_i32_1 = arith.constant 0 : i32
    return %c0_i32, %c0_i32_0 : i32, i32
  }
  func.func @transform_4(%arg0: i32) -> (i32, i32, i32) {
    %c0_i32 = arith.constant 0 : i32
    %c0_i32_0 = arith.constant 0 : i32
    %c0_i32_1 = arith.constant 0 : i32
    return %arg0, %c0_i32, %c0_i32_0 : i32, i32, i32
  }
  func.func @transform_5(%arg0: i32) -> (i32, i32, i32) {
    %c0_i32 = arith.constant 0 : i32
    %c0_i32_0 = arith.constant 0 : i32
    %c0_i32_1 = arith.constant 0 : i32
    return %arg0, %c0_i32, %c0_i32_0 : i32, i32, i32
  }
  func.func @transform_6(%arg0: i32) -> (i32, i32) {
    %c0_i32 = arith.constant 0 : i32
    %c0_i32_0 = arith.constant 0 : i32
    %c0_i32_1 = arith.constant 0 : i32
    return %c0_i32, %c0_i32_0 : i32, i32
  }
}

</mosaic_0001>

<llo_original>
// kernel: _encoder_forward.1
$region0: #{_encoder_forward.1}
  #allocation0 [shape = 'u32[]', space=smem, size = 0x4, offset = 0x4, fixed_abs, tag = 'smem constant byte address 0x4 - core index']
  #allocation1 [shape = 'u32[144,128]{1,0:T(1,128)}', space=vmem, size = 0x12000, scoped, tag = 'internal scratch']
  #allocation2 [shape = 'f32[16,128]{1,0:T(8,128)}', space=vmem, size = 0x2000, scoped, tag = 'scratch operand']
  %s0 = inlined_call_operand.vmem [shape: f32[16,128], index: 0, kind: input, shape index: {}]
  %s1 = inlined_call_operand.vmem [shape: bf16[16,16], index: 1, kind: input, shape index: {}]
  %s2 = inlined_call_operand.vmem [shape: bf16[128,128], index: 2, kind: input, shape index: {}]
  %s3 = inlined_call_operand.vmem [shape: bf16[128,128], index: 3, kind: input, shape index: {}]
  %s4 = inlined_call_operand.vmem [shape: bf16[2,128,128], index: 4, kind: input, shape index: {}]
  %s5 = inlined_call_operand.vmem [shape: f32[2,1,128], index: 5, kind: input, shape index: {}]
  %s6 = inlined_call_operand.hbm [shape: f32[16,128], index: 6, kind: output, shape index: {}]
  %s7 = sld [smem:[#allocation0]]
  $region65: #{_encoder_forward.1} parent=0
    _
  %s9 = ssub.s32 1, %s7
  %s10 = scalar_select 0, %s9, %s7
  $region1: #{_encoder_forward.1} parent=0
    #allocation3 [shape = 'u8[8192]{0}', space=vmem, size = 0x2000, scoped, tag = 'output window, operand 0, single buffered']
    #allocation4 [shape = 's32[2]{0}', space=sflag, size = 0x8, scoped, tag = 'scoped memory for _encoder_forward.1']
    %11 = vsyncpa [#allocation4], 0
    loop: start=0, step=1, limit=4
    $region2: #{_encoder_forward.1} parent=1 // loop_pre_header
      _
    $region3: #{_encoder_forward.1} parent=1 // loop_header
      %s13 = sphi 0, %s17
      %p14 = scmp.ge.s32.totalorder %s13, 4
      %s21 = sphi 0, %s21
      %s23 = sphi 0, %s21
      %s24 = sphi 0, %s23
      %s38 = sphi 0, %s24
      %s42 = sphi 0, %s42
      %s44 = sphi 0, %s42
      %s45 = sphi 0, %s44
      %s59 = sphi 0, %s45
      %s63 = sphi 0, %s63
      %s65 = sphi 0, %s63
      %s66 = sphi 0, %s65
      %s80 = sphi 0, %s66
      %s84 = sphi 0, %s84
      %s86 = sphi 0, %s84
      %s87 = sphi 0, %s86
      %s101 = sphi 0, %s87
      %s107 = sphi 0, %s109
      %s110 = sphi 0, %s107
      %s111 = sphi 0, %s110
      %s127 = sphi 0, %s111
      %s133 = sphi 0, %s135
      %s136 = sphi 0, %s133
      %s137 = sphi 0, %s136
      %s153 = sphi 0, %s137
      %s157 = sphi 0, %s157
      %s159 = sphi 0, %s157
      %s160 = sphi 0, %s159
      %s174 = sphi 0, %s160
    $region4: #{_encoder_forward.1} parent=1 // loop_header_branch
      %16 = sbr.rel (%p14) target = $region8
    $region5: #{_encoder_forward.1} parent=1 // loop_body
      %s18 = ssub.s32 %s13, 1
      %s19 = ssub.s32 %s13, 2
      %s20 = sadd.s32 %s13, 1
      %s22 = sadd.s32 %s21, 1
      %p25 = scmp.eq.s32.totalorder %s13, 1
      %p26 = scmp.ne.s32.totalorder %s21, %s23
      %p27 = scmp.eq.s32.totalorder %s13, 0
      %p28 = por %p26, %p27
      %p29 = scmp.ne.s32.totalorder %s21, %s23
      %p30 = scmp.eq.s32.totalorder %s18, 1
      %p31 = por %p29, %p30
      %p32 = scmp.ne.s32.totalorder %s23, %s24
      %p33 = scmp.eq.s32.totalorder %s18, 0
      %p34 = por %p32, %p33
      %p35 = scmp.ne.s32.totalorder %s23, %s24
      %p36 = scmp.eq.s32.totalorder %s19, 1
      %p37 = por %p35, %p36
      %p39 = scmp.ne.s32.totalorder %s24, %s38
      %p40 = scmp.eq.s32.totalorder %s19, 0
      %p41 = por %p39, %p40
      %s43 = sadd.s32 %s42, 1
      %p46 = scmp.eq.s32.totalorder %s13, 1
      %p47 = scmp.ne.s32.totalorder %s42, %s44
      %p48 = scmp.eq.s32.totalorder %s13, 0
      %p49 = por %p47, %p48
      %p50 = scmp.ne.s32.totalorder %s42, %s44
      %p51 = scmp.eq.s32.totalorder %s18, 1
      %p52 = por %p50, %p51
      %p53 = scmp.ne.s32.totalorder %s44, %s45
      %p54 = scmp.eq.s32.totalorder %s18, 0
      %p55 = por %p53, %p54
      %p56 = scmp.ne.s32.totalorder %s44, %s45
      %p57 = scmp.eq.s32.totalorder %s19, 1
      %p58 = por %p56, %p57
      %p60 = scmp.ne.s32.totalorder %s45, %s59
      %p61 = scmp.eq.s32.totalorder %s19, 0
      %p62 = por %p60, %p61
      %s64 = sadd.s32 %s63, 1
      %p67 = scmp.eq.s32.totalorder %s13, 1
      %p68 = scmp.ne.s32.totalorder %s63, %s65
      %p69 = scmp.eq.s32.totalorder %s13, 0
      %p70 = por %p68, %p69
      %p71 = scmp.ne.s32.totalorder %s63, %s65
      %p72 = scmp.eq.s32.totalorder %s18, 1
      %p73 = por %p71, %p72
      %p74 = scmp.ne.s32.totalorder %s65, %s66
      %p75 = scmp.eq.s32.totalorder %s18, 0
      %p76 = por %p74, %p75
      %p77 = scmp.ne.s32.totalorder %s65, %s66
      %p78 = scmp.eq.s32.totalorder %s19, 1
      %p79 = por %p77, %p78
      %p81 = scmp.ne.s32.totalorder %s66, %s80
      %p82 = scmp.eq.s32.totalorder %s19, 0
      %p83 = por %p81, %p82
      %s85 = sadd.s32 %s84, 1
      %p88 = scmp.eq.s32.totalorder %s13, 1
      %p89 = scmp.ne.s32.totalorder %s84, %s86
      %p90 = scmp.eq.s32.totalorder %s13, 0
      %p91 = por %p89, %p90
      %p92 = scmp.ne.s32.totalorder %s84, %s86
      %p93 = scmp.eq.s32.totalorder %s18, 1
      %p94 = por %p92, %p93
      %p95 = scmp.ne.s32.totalorder %s86, %s87
      %p96 = scmp.eq.s32.totalorder %s18, 0
      %p97 = por %p95, %p96
      %p98 = scmp.ne.s32.totalorder %s86, %s87
      %p99 = scmp.eq.s32.totalorder %s19, 1
      %p100 = por %p98, %p99
      %p102 = scmp.ne.s32.totalorder %s87, %s101
      %p103 = scmp.eq.s32.totalorder %s19, 0
      %p104 = por %p102, %p103
      %s105 = ssub.s32 %s13, %s20
      %p106 = scmp.eq.s32.totalorder %s105, 0
      %s108 = sadd.s32 %s107, 1
      %s109 = scalar_select %p106, %s107, %s108
      %p112 = pneg %p106
      %p113 = scmp.eq.s32.totalorder %s13, 1
      %p114 = por %p112, %p113
      %p115 = scmp.ne.s32.totalorder %s107, %s110
      %p116 = scmp.eq.s32.totalorder %s13, 0
      %p117 = por %p115, %p116
      %p118 = scmp.ne.s32.totalorder %s107, %s110
      %p119 = scmp.eq.s32.totalorder %s18, 1
      %p120 = por %p118, %p119
      %p121 = scmp.ne.s32.totalorder %s110, %s111
      %p122 = scmp.eq.s32.totalorder %s18, 0
      %p123 = por %p121, %p122
      %p124 = scmp.ne.s32.totalorder %s110, %s111
      %p125 = scmp.eq.s32.totalorder %s19, 1
      %p126 = por %p124, %p125
      %p128 = scmp.ne.s32.totalorder %s111, %s127
      %p129 = scmp.eq.s32.totalorder %s19, 0
      %p130 = por %p128, %p129
      %s131 = ssub.s32 %s13, %s20
      %p132 = scmp.eq.s32.totalorder %s131, 0
      %s134 = sadd.s32 %s133, 1
      %s135 = scalar_select %p132, %s133, %s134
      %p138 = pneg %p132
      %p139 = scmp.eq.s32.totalorder %s13, 1
      %p140 = por %p138, %p139
      %p141 = scmp.ne.s32.totalorder %s133, %s136
      %p142 = scmp.eq.s32.totalorder %s13, 0
      %p143 = por %p141, %p142
      %p144 = scmp.ne.s32.totalorder %s133, %s136
      %p145 = scmp.eq.s32.totalorder %s18, 1
      %p146 = por %p144, %p145
      %p147 = scmp.ne.s32.totalorder %s136, %s137
      %p148 = scmp.eq.s32.totalorder %s18, 0
      %p149 = por %p147, %p148
      %p150 = scmp.ne.s32.totalorder %s136, %s137
      %p151 = scmp.eq.s32.totalorder %s19, 1
      %p152 = por %p150, %p151
      %p154 = scmp.ne.s32.totalorder %s137, %s153
      %p155 = scmp.eq.s32.totalorder %s19, 0
      %p156 = por %p154, %p155
      %s158 = sadd.s32 %s157, 1
      %p161 = scmp.eq.s32.totalorder %s13, 1
      %p162 = scmp.ne.s32.totalorder %s157, %s159
      %p163 = scmp.eq.s32.totalorder %s13, 0
      %p164 = por %p162, %p163
      %p165 = scmp.ne.s32.totalorder %s157, %s159
      %p166 = scmp.eq.s32.totalorder %s18, 1
      %p167 = por %p165, %p166
      %p168 = scmp.ne.s32.totalorder %s159, %s160
      %p169 = scmp.eq.s32.totalorder %s18, 0
      %p170 = por %p168, %p169
      %p171 = scmp.ne.s32.totalorder %s159, %s160
      %p172 = scmp.eq.s32.totalorder %s19, 1
      %p173 = por %p171, %p172
      %p175 = scmp.ne.s32.totalorder %s160, %s174
      %p176 = scmp.eq.s32.totalorder %s19, 0
      %p177 = por %p175, %p176
      %p178 = scmp.le.s32.totalorder 1, %s13
      %p179 = scmp.lt.s32.totalorder %s13, 3
      %p180 = pnand %p178, %p179
      %p181 = pneg %p180
      // Predicated region
      $region9: #{_encoder_forward.1} parent=5 // pred_check
        _
      $region10: #{_encoder_forward.1} parent=5 // pred_check_branch
        %183 = sbr.rel (%p180) target = $region12
      $region11: #{_encoder_forward.1} parent=5 // pred_region
        %s184 = ssub.s32 %s13, 1
        // Predicated region
        $region13: #{_encoder_forward.1} parent=11 // pred_check
          %p185 = pneg %p34
        $region14: #{_encoder_forward.1} parent=11 // pred_check_branch
          %187 = sbr.rel (%p185) target = $region16
        $region15: #{_encoder_forward.1} parent=11 // pred_region
          _
        $region16: #{_encoder_forward.1} parent=11 // pred_fallthru
          _
        // Predicated region
        $region17: #{_encoder_forward.1} parent=11 // pred_check
          %p188 = pneg %p55
        $region18: #{_encoder_forward.1} parent=11 // pred_check_branch
          %190 = sbr.rel (%p188) target = $region20
        $region19: #{_encoder_forward.1} parent=11 // pred_region
          _
        $region20: #{_encoder_forward.1} parent=11 // pred_fallthru
          _
        // Predicated region
        $region21: #{_encoder_forward.1} parent=11 // pred_check
          %p191 = pneg %p76
        $region22: #{_encoder_forward.1} parent=11 // pred_check_branch
          %193 = sbr.rel (%p191) target = $region24
        $region23: #{_encoder_forward.1} parent=11 // pred_region
          _
        $region24: #{_encoder_forward.1} parent=11 // pred_fallthru
          _
        // Predicated region
        $region25: #{_encoder_forward.1} parent=11 // pred_check
          %p194 = pneg %p97
        $region26: #{_encoder_forward.1} parent=11 // pred_check_branch
          %196 = sbr.rel (%p194) target = $region28
        $region27: #{_encoder_forward.1} parent=11 // pred_region
          _
        $region28: #{_encoder_forward.1} parent=11 // pred_fallthru
          _
      $region12: #{_encoder_forward.1} parent=5 // pred_fallthru
        _
      %p197 = scmp.lt.s32.totalorder %s13, 2
      // Predicated region
      $region29: #{_encoder_forward.1} parent=5 // pred_check
        %p198 = pneg %p197
      $region30: #{_encoder_forward.1} parent=5 // pred_check_branch
        %200 = sbr.rel (%p198) target = $region32
      $region31: #{_encoder_forward.1} parent=5 // pred_region
        // Predicated region
        $region33: #{_encoder_forward.1} parent=31 // pred_check
          %p201 = pneg %p117
        $region34: #{_encoder_forward.1} parent=31 // pred_check_branch
          %203 = sbr.rel (%p201) target = $region36
        $region35: #{_encoder_forward.1} parent=31 // pred_region
          %p204 = scmp.lt.s32.totalorder %s13, 1
          %s205 = scalar_select %p204, %s13, 1
          %s206 = smul.addr %s205, 16
          %s207 = smul.addr %s206, 4
          %s208 = scalar_lea.vmem %s4, %s207
        $region36: #{_encoder_forward.1} parent=31 // pred_fallthru
          _
        // Predicated region
        $region37: #{_encoder_forward.1} parent=31 // pred_check
          %p209 = pneg %p143
        $region38: #{_encoder_forward.1} parent=31 // pred_check_branch
          %211 = sbr.rel (%p209) target = $region40
        $region39: #{_encoder_forward.1} parent=31 // pred_region
          %p212 = scmp.lt.s32.totalorder %s13, 1
          %s213 = scalar_select %p212, %s13, 1
          %s214 = scalar_lea.vmem %s5, %s213
        $region40: #{_encoder_forward.1} parent=31 // pred_fallthru
          _
      $region32: #{_encoder_forward.1} parent=5 // pred_fallthru
        _
      %p215 = scmp.le.s32.totalorder 1, %s13
      %p216 = scmp.lt.s32.totalorder %s13, 3
      %p217 = pnand %p215, %p216
      %p218 = pneg %p217
      // Predicated region
      $region41: #{_encoder_forward.1} parent=5 // pred_check
        _
      $region42: #{_encoder_forward.1} parent=5 // pred_check_branch
        %220 = sbr.rel (%p217) target = $region44
      $region43: #{_encoder_forward.1} parent=5 // pred_region
        %s221 = ssub.s32 %s13, 1
        %p222 = pneg %p34
        %p223 = pneg %p31
        %p224 = pneg %p55
        %p225 = pneg %p52
        %p226 = pneg %p76
        %p227 = pneg %p73
        %p228 = pneg %p97
        %p229 = pneg %p94
        %p230 = scmp.lt.s32.totalorder %s18, 1
        %s231 = scalar_select %p230, %s18, 1
        %s232 = smul.addr %s231, 16
        %s233 = smul.addr %s232, 4
        %s234 = scalar_lea.vmem %s4, %s233
        %p235 = pneg %p123
        %p236 = pneg %p120
        %p237 = scmp.lt.s32.totalorder %s18, 1
        %s238 = scalar_select %p237, %s18, 1
        %s239 = scalar_lea.vmem %s5, %s238
        %p240 = pneg %p149
        %p241 = pneg %p146
        %p242 = pneg %p170
        %p243 = pneg %p167
        %p244 = scmp.lt.s32.totalorder %s18, 1
        %s245 = scalar_select %p244, %s18, 1
        %s246 = smul.addr %s245, 16
        %s247 = smul.addr %s246, 4
        %s248 = scalar_lea.vmem %s4, %s247
        %p249 = scmp.lt.s32.totalorder %s18, 1
        %s250 = scalar_select %p249, %s18, 1
        %s251 = scalar_lea.vmem %s5, %s250
        %v253 = vld [vmem:[%s1] sm:$0xf]
        %v254 = vld [vmem:[%s1 + $0x4] sm:$0xf]
        %p255 = scmp.eq.s32.totalorder %s18, 0
        // Predicated region
        $region45: #{_encoder_forward.1} parent=43 // pred_check
          %p256 = pneg %p255
        $region46: #{_encoder_forward.1} parent=43 // pred_check_branch
          %258 = sbr.rel (%p256) target = $region48
        $region47: #{_encoder_forward.1} parent=43 // pred_region
          %v259 = vld [vmem:[%s0] sm:$0xff]
          %v260 = vld [vmem:[%s0 + $0x8] sm:$0xff]
          %v261 = vpack.c.bf16 %v260, %v259
          %v264 = vunpack.c.l.b16 %v253
          %v265 = vunpack.c.l.b16 %v254
          %v266 = vpack.c.b16 %v265, %v264
          %vm267 = vcmask 130048
          %v269 = vsel %vm267, %v266, 0
          %271 = vmatprep.subr.bf16.mxu0 0
          %272 = vmatpush1.bf16.msra.mxu0 0
          %273 = vmatprep.subr.bf16.mxu0 0
          %274 = vmatpush1.bf16.msra.mxu0 0
          %275 = vmatprep.subr.bf16.mxu0 0
          %276 = vmatpush1.bf16.msra.mxu0 0
          %277 = vmatprep.subr.bf16.mxu0 0
          %278 = vmatpush1.bf16.msra.mxu0 0
          %279 = vmatprep.subr.bf16.mxu0 0
          %280 = vmatpush1.bf16.msra.mxu0 0
          %281 = vmatprep.subr.bf16.mxu0 0
          %282 = vmatpush1.bf16.msra.mxu0 0
          %283 = vmatprep.subr.bf16.mxu0 0
          %284 = vmatpush1.bf16.msra.mxu0 0
          %285 = vmatprep.subr.bf16.mxu0 0
          %286 = vmatpush1.bf16.msra.mxu0 %v261
          %287 = vmatprep.subr.bf16.mxu0 0
          %288 = vmatpush2.bf16.msra.mxu0 0
          %289 = vmatprep.subr.bf16.mxu0 0
          %290 = vmatpush2.bf16.msra.mxu0 0
          %291 = vmatprep.subr.bf16.mxu0 0
          %292 = vmatpush2.bf16.msra.mxu0 0
          %293 = vmatprep.subr.bf16.mxu0 0
          %294 = vmatpush2.bf16.msra.mxu0 0
          %295 = vmatprep.subr.bf16.mxu0 0
          %296 = vmatpush2.bf16.msra.mxu0 0
          %297 = vmatprep.subr.bf16.mxu0 0
          %298 = vmatpush2.bf16.msra.mxu0 0
          %299 = vmatprep.subr.bf16.mxu0 0
          %300 = vmatpush2.bf16.msra.mxu0 0
          %301 = vmatprep.subr.bf16.mxu0 0
          %302 = vmatpush2.bf16.msra.mxu0 0
          %303 = vmatprep.mubr.bf16.mxu0 0
          %304 = vmatmul.mubr.bf16.gmra.mxu0 %v269
          %v305 = vpop.f32.mrf.mxu0
          %v306 = vadd.f32 0.0, %v305
          %v307 = vpop.f32.mrf.mxu0
          %v308 = vpop.f32.mrf.mxu0
          %v309 = vadd.f32 0.0, %v308
          %v310 = vpop.f32.mrf.mxu0
          %311 = vdwg.mxu0
          %v312 = vadd.f32 %v259, %v306
          %v313 = vadd.f32 %v260, %v309
          %v314 = vpack.c.bf16 %v313, %v312
          %v315 = vld [vmem:[%s2] sm:$0xf]
          %v316 = vld [vmem:[%s2 + $0x4] sm:$0xf]
          %v317 = vld [vmem:[%s2 + $0x8] sm:$0xf]
          %v318 = vld [vmem:[%s2 + $0xc] sm:$0xf]
          %v319 = vld [vmem:[%s2 + $0x10] sm:$0xf]
          %v320 = vld [vmem:[%s2 + $0x14] sm:$0xf]
          %v321 = vld [vmem:[%s2 + $0x18] sm:$0xf]
          %v322 = vld [vmem:[%s2 + $0x1c] sm:$0xf]
          %v323 = vld [vmem:[%s2 + $0x20] sm:$0xf]
          %v324 = vld [vmem:[%s2 + $0x24] sm:$0xf]
          %v325 = vld [vmem:[%s2 + $0x28] sm:$0xf]
          %v326 = vld [vmem:[%s2 + $0x2c] sm:$0xf]
          %v327 = vld [vmem:[%s2 + $0x30] sm:$0xf]
          %v328 = vld [vmem:[%s2 + $0x34] sm:$0xf]
          %v329 = vld [vmem:[%s2 + $0x38] sm:$0xf]
          %v330 = vld [vmem:[%s2 + $0x3c] sm:$0xf]
          %v347 = vunpack.c.l.b16 %v315
          %v348 = vunpack.c.l.b16 %v316
          %v349 = vunpack.c.l.b16 %v317
          %v350 = vunpack.c.l.b16 %v318
          %v351 = vunpack.c.l.b16 %v319
          %v352 = vunpack.c.l.b16 %v320
          %v353 = vunpack.c.l.b16 %v321
          %v354 = vunpack.c.l.b16 %v322
          %v355 = vunpack.c.l.b16 %v323
          %v356 = vunpack.c.l.b16 %v324
          %v357 = vunpack.c.l.b16 %v325
          %v358 = vunpack.c.l.b16 %v326
          %v359 = vunpack.c.l.b16 %v327
          %v360 = vunpack.c.l.b16 %v328
          %v361 = vunpack.c.l.b16 %v329
          %v362 = vunpack.c.l.b16 %v330
          %v363 = vpack.c.b16 %v348, %v347
          %v364 = vpack.c.b16 %v350, %v349
          %v365 = vpack.c.b16 %v352, %v351
          %v366 = vpack.c.b16 %v354, %v353
          %v367 = vpack.c.b16 %v356, %v355
          %v368 = vpack.c.b16 %v358, %v357
          %v369 = vpack.c.b16 %v360, %v359
          %v370 = vpack.c.b16 %v362, %v361
          %379 = vmatprep.subr.bf16.mxu0 0
          %380 = vmatpush1.bf16.msra.mxu0 %v370
          %381 = vmatprep.subr.bf16.mxu0 0
          %382 = vmatpush1.bf16.msra.mxu0 %v369
          %383 = vmatprep.subr.bf16.mxu0 0
          %384 = vmatpush1.bf16.msra.mxu0 %v368
          %385 = vmatprep.subr.bf16.mxu0 0
          %386 = vmatpush1.bf16.msra.mxu0 %v367
          %387 = vmatprep.subr.bf16.mxu0 0
          %388 = vmatpush1.bf16.msra.mxu0 %v366
          %389 = vmatprep.subr.bf16.mxu0 0
          %390 = vmatpush1.bf16.msra.mxu0 %v365
          %391 = vmatprep.subr.bf16.mxu0 0
          %392 = vmatpush1.bf16.msra.mxu0 %v364
          %393 = vmatprep.subr.bf16.mxu0 0
          %394 = vmatpush1.bf16.msra.mxu0 %v363
          %395 = vmatprep.subr.bf16.mxu0 0
          %396 = vmatpush2.bf16.msra.mxu0 0
          %397 = vmatprep.subr.bf16.mxu0 0
          %398 = vmatpush2.bf16.msra.mxu0 0
          %399 = vmatprep.subr.bf16.mxu0 0
          %400 = vmatpush2.bf16.msra.mxu0 0
          %401 = vmatprep.subr.bf16.mxu0 0
          %402 = vmatpush2.bf16.msra.mxu0 0
          %403 = vmatprep.subr.bf16.mxu0 0
          %404 = vmatpush2.bf16.msra.mxu0 0
          %405 = vmatprep.subr.bf16.mxu0 0
          %406 = vmatpush2.bf16.msra.mxu0 0
          %407 = vmatprep.subr.bf16.mxu0 0
          %408 = vmatpush2.bf16.msra.mxu0 0
          %409 = vmatprep.subr.bf16.mxu0 0
          %410 = vmatpush2.bf16.msra.mxu0 0
          %411 = vmatprep.mubr.bf16.mxu0 0
          %412 = vmatmul.mubr.bf16.gmra.mxu0 %v314
          %v413 = vpop.f32.mrf.mxu0
          %v414 = vadd.f32 0.0, %v413
          %v415 = vpop.f32.mrf.mxu0
          %v416 = vpop.f32.mrf.mxu0
          %v417 = vadd.f32 0.0, %v416
          %v418 = vpop.f32.mrf.mxu0
          %419 = vdwg.mxu0
          %v420 = vmax.f32 %v414, 0.0
          %v421 = vmax.f32 %v417, 0.0
          %v422 = vpack.c.bf16 %v421, %v420
          %v423 = vld [vmem:[%s3] sm:$0xf]
          %v424 = vld [vmem:[%s3 + $0x4] sm:$0xf]
          %v425 = vld [vmem:[%s3 + $0x8] sm:$0xf]
          %v426 = vld [vmem:[%s3 + $0xc] sm:$0xf]
          %v427 = vld [vmem:[%s3 + $0x10] sm:$0xf]
          %v428 = vld [vmem:[%s3 + $0x14] sm:$0xf]
          %v429 = vld [vmem:[%s3 + $0x18] sm:$0xf]
          %v430 = vld [vmem:[%s3 + $0x1c] sm:$0xf]
          %v431 = vld [vmem:[%s3 + $0x20] sm:$0xf]
          %v432 = vld [vmem:[%s3 + $0x24] sm:$0xf]
          %v433 = vld [vmem:[%s3 + $0x28] sm:$0xf]
          %v434 = vld [vmem:[%s3 + $0x2c] sm:$0xf]
          %v435 = vld [vmem:[%s3 + $0x30] sm:$0xf]
          %v436 = vld [vmem:[%s3 + $0x34] sm:$0xf]
          %v437 = vld [vmem:[%s3 + $0x38] sm:$0xf]
          %v438 = vld [vmem:[%s3 + $0x3c] sm:$0xf]
          %v455 = vunpack.c.l.b16 %v423
          %v456 = vunpack.c.l.b16 %v424
          %v457 = vunpack.c.l.b16 %v425
          %v458 = vunpack.c.l.b16 %v426
          %v459 = vunpack.c.l.b16 %v427
          %v460 = vunpack.c.l.b16 %v428
          %v461 = vunpack.c.l.b16 %v429
          %v462 = vunpack.c.l.b16 %v430
          %v463 = vunpack.c.l.b16 %v431
          %v464 = vunpack.c.l.b16 %v432
          %v465 = vunpack.c.l.b16 %v433
          %v466 = vunpack.c.l.b16 %v434
          %v467 = vunpack.c.l.b16 %v435
          %v468 = vunpack.c.l.b16 %v436
          %v469 = vunpack.c.l.b16 %v437
          %v470 = vunpack.c.l.b16 %v438
          %v471 = vpack.c.b16 %v456, %v455
          %v472 = vpack.c.b16 %v458, %v457
          %v473 = vpack.c.b16 %v460, %v459
          %v474 = vpack.c.b16 %v462, %v461
          %v475 = vpack.c.b16 %v464, %v463
          %v476 = vpack.c.b16 %v466, %v465
          %v477 = vpack.c.b16 %v468, %v467
          %v478 = vpack.c.b16 %v470, %v469
          %487 = vmatprep.subr.bf16.mxu0 0
          %488 = vmatpush1.bf16.msra.mxu0 %v478
          %489 = vmatprep.subr.bf16.mxu0 0
          %490 = vmatpush1.bf16.msra.mxu0 %v477
          %491 = vmatprep.subr.bf16.mxu0 0
          %492 = vmatpush1.bf16.msra.mxu0 %v476
          %493 = vmatprep.subr.bf16.mxu0 0
          %494 = vmatpush1.bf16.msra.mxu0 %v475
          %495 = vmatprep.subr.bf16.mxu0 0
          %496 = vmatpush1.bf16.msra.mxu0 %v474
          %497 = vmatprep.subr.bf16.mxu0 0
          %498 = vmatpush1.bf16.msra.mxu0 %v473
          %499 = vmatprep.subr.bf16.mxu0 0
          %500 = vmatpush1.bf16.msra.mxu0 %v472
          %501 = vmatprep.subr.bf16.mxu0 0
          %502 = vmatpush1.bf16.msra.mxu0 %v471
          %503 = vmatprep.subr.bf16.mxu0 0
          %504 = vmatpush2.bf16.msra.mxu0 0
          %505 = vmatprep.subr.bf16.mxu0 0
          %506 = vmatpush2.bf16.msra.mxu0 0
          %507 = vmatprep.subr.bf16.mxu0 0
          %508 = vmatpush2.bf16.msra.mxu0 0
          %509 = vmatprep.subr.bf16.mxu0 0
          %510 = vmatpush2.bf16.msra.mxu0 0
          %511 = vmatprep.subr.bf16.mxu0 0
          %512 = vmatpush2.bf16.msra.mxu0 0
          %513 = vmatprep.subr.bf16.mxu0 0
          %514 = vmatpush2.bf16.msra.mxu0 0
          %515 = vmatprep.subr.bf16.mxu0 0
          %516 = vmatpush2.bf16.msra.mxu0 0
          %517 = vmatprep.subr.bf16.mxu0 0
          %518 = vmatpush2.bf16.msra.mxu0 0
          %519 = vmatprep.mubr.bf16.mxu0 0
          %520 = vmatmul.mubr.bf16.gmra.mxu0 %v422
          %v521 = vpop.f32.mrf.mxu0
          %v522 = vadd.f32 0.0, %v521
          %v523 = vpop.f32.mrf.mxu0
          %v524 = vpop.f32.mrf.mxu0
          %v525 = vadd.f32 0.0, %v524
          %v526 = vpop.f32.mrf.mxu0
          %527 = vdwg.mxu0
          %v528 = vmax.f32 %v522, 0.0
          %v529 = vmax.f32 %v525, 0.0
          %530 = vst [vmem:[#allocation2] sm:$0xff] %v528
          %531 = vst [vmem:[#allocation2 + $0x8] sm:$0xff] %v529
        $region48: #{_encoder_forward.1} parent=43 // pred_fallthru
          _
        %v532 = vld [vmem:[#allocation2] sm:$0xff]
        %v533 = vld [vmem:[#allocation2 + $0x8] sm:$0xff]
        %v534 = vpack.c.bf16 %v533, %v532
        %v537 = vunpack.c.l.b16 %v253
        %v538 = vunpack.c.l.b16 %v254
        %v539 = vpack.c.b16 %v538, %v537
        %vm540 = vcmask 130048
        %v542 = vsel %vm540, %v539, 0
        %544 = vmatprep.subr.bf16.mxu0 0
        %545 = vmatpush1.bf16.msra.mxu0 0
        %546 = vmatprep.subr.bf16.mxu0 0
        %547 = vmatpush1.bf16.msra.mxu0 0
        %548 = vmatprep.subr.bf16.mxu0 0
        %549 = vmatpush1.bf16.msra.mxu0 0
        %550 = vmatprep.subr.bf16.mxu0 0
        %551 = vmatpush1.bf16.msra.mxu0 0
        %552 = vmatprep.subr.bf16.mxu0 0
        %553 = vmatpush1.bf16.msra.mxu0 0
        %554 = vmatprep.subr.bf16.mxu0 0
        %555 = vmatpush1.bf16.msra.mxu0 0
        %556 = vmatprep.subr.bf16.mxu0 0
        %557 = vmatpush1.bf16.msra.mxu0 0
        %558 = vmatprep.subr.bf16.mxu0 0
        %559 = vmatpush1.bf16.msra.mxu0 %v534
        %560 = vmatprep.subr.bf16.mxu0 0
        %561 = vmatpush2.bf16.msra.mxu0 0
        %562 = vmatprep.subr.bf16.mxu0 0
        %563 = vmatpush2.bf16.msra.mxu0 0
        %564 = vmatprep.subr.bf16.mxu0 0
        %565 = vmatpush2.bf16.msra.mxu0 0
        %566 = vmatprep.subr.bf16.mxu0 0
        %567 = vmatpush2.bf16.msra.mxu0 0
        %568 = vmatprep.subr.bf16.mxu0 0
        %569 = vmatpush2.bf16.msra.mxu0 0
        %570 = vmatprep.subr.bf16.mxu0 0
        %571 = vmatpush2.bf16.msra.mxu0 0
        %572 = vmatprep.subr.bf16.mxu0 0
        %573 = vmatpush2.bf16.msra.mxu0 0
        %574 = vmatprep.subr.bf16.mxu0 0
        %575 = vmatpush2.bf16.msra.mxu0 0
        %576 = vmatprep.mubr.bf16.mxu0 0
        %577 = vmatmul.mubr.bf16.gmra.mxu0 %v542
        %v578 = vpop.f32.mrf.mxu0
        %v579 = vadd.f32 0.0, %v578
        %v580 = vpop.f32.mrf.mxu0
        %v581 = vpop.f32.mrf.mxu0
        %v582 = vadd.f32 0.0, %v581
        %v583 = vpop.f32.mrf.mxu0
        %584 = vdwg.mxu0
        %v585 = vadd.f32 %v532, %v579
        %v586 = vadd.f32 %v533, %v582
        %v587 = vmax.f32 %v585, 0.0
        %v588 = vmax.f32 %v586, 0.0
        %v589 = vpack.c.bf16 %v588, %v587
        %v590 = vld [vmem:[%s248] sm:$0xf]
        %v591 = vld [vmem:[%s248 + $0x4] sm:$0xf]
        %v592 = vld [vmem:[%s248 + $0x8] sm:$0xf]
        %v593 = vld [vmem:[%s248 + $0xc] sm:$0xf]
        %v594 = vld [vmem:[%s248 + $0x10] sm:$0xf]
        %v595 = vld [vmem:[%s248 + $0x14] sm:$0xf]
        %v596 = vld [vmem:[%s248 + $0x18] sm:$0xf]
        %v597 = vld [vmem:[%s248 + $0x1c] sm:$0xf]
        %v598 = vld [vmem:[%s248 + $0x20] sm:$0xf]
        %v599 = vld [vmem:[%s248 + $0x24] sm:$0xf]
        %v600 = vld [vmem:[%s248 + $0x28] sm:$0xf]
        %v601 = vld [vmem:[%s248 + $0x2c] sm:$0xf]
        %v602 = vld [vmem:[%s248 + $0x30] sm:$0xf]
        %v603 = vld [vmem:[%s248 + $0x34] sm:$0xf]
        %v604 = vld [vmem:[%s248 + $0x38] sm:$0xf]
        %v605 = vld [vmem:[%s248 + $0x3c] sm:$0xf]
        %v606 = vld [vmem:[%s251] sm:$0x1]
        %v608 = vlaneseq
        %v609 = vshrl.u32 %v608, 7
        %v610 = vsub.s32 0, %v609
        %v611 = vrot.slane %v606, %v610
        %v629 = vunpack.c.l.b16 %v590
        %v630 = vunpack.c.l.b16 %v591
        %v631 = vunpack.c.l.b16 %v592
        %v632 = vunpack.c.l.b16 %v593
        %v633 = vunpack.c.l.b16 %v594
        %v634 = vunpack.c.l.b16 %v595
        %v635 = vunpack.c.l.b16 %v596
        %v636 = vunpack.c.l.b16 %v597
        %v637 = vunpack.c.l.b16 %v598
        %v638 = vunpack.c.l.b16 %v599
        %v639 = vunpack.c.l.b16 %v600
        %v640 = vunpack.c.l.b16 %v601
        %v641 = vunpack.c.l.b16 %v602
        %v642 = vunpack.c.l.b16 %v603
        %v643 = vunpack.c.l.b16 %v604
        %v644 = vunpack.c.l.b16 %v605
        %v645 = vpack.c.b16 %v630, %v629
        %v646 = vpack.c.b16 %v632, %v631
        %v647 = vpack.c.b16 %v634, %v633
        %v648 = vpack.c.b16 %v636, %v635
        %v649 = vpack.c.b16 %v638, %v637
        %v650 = vpack.c.b16 %v640, %v639
        %v651 = vpack.c.b16 %v642, %v641
        %v652 = vpack.c.b16 %v644, %v643
        %661 = vmatprep.subr.bf16.mxu0 0
        %662 = vmatpush1.bf16.msra.mxu0 %v652
        %663 = vmatprep.subr.bf16.mxu0 0
        %664 = vmatpush1.bf16.msra.mxu0 %v651
        %665 = vmatprep.subr.bf16.mxu0 0
        %666 = vmatpush1.bf16.msra.mxu0 %v650
        %667 = vmatprep.subr.bf16.mxu0 0
        %668 = vmatpush1.bf16.msra.mxu0 %v649
        %669 = vmatprep.subr.bf16.mxu0 0
        %670 = vmatpush1.bf16.msra.mxu0 %v648
        %671 = vmatprep.subr.bf16.mxu0 0
        %672 = vmatpush1.bf16.msra.mxu0 %v647
        %673 = vmatprep.subr.bf16.mxu0 0
        %674 = vmatpush1.bf16.msra.mxu0 %v646
        %675 = vmatprep.subr.bf16.mxu0 0
        %676 = vmatpush1.bf16.msra.mxu0 %v645
        %677 = vmatprep.subr.bf16.mxu0 0
        %678 = vmatpush2.bf16.msra.mxu0 0
        %679 = vmatprep.subr.bf16.mxu0 0
        %680 = vmatpush2.bf16.msra.mxu0 0
        %681 = vmatprep.subr.bf16.mxu0 0
        %682 = vmatpush2.bf16.msra.mxu0 0
        %683 = vmatprep.subr.bf16.mxu0 0
        %684 = vmatpush2.bf16.msra.mxu0 0
        %685 = vmatprep.subr.bf16.mxu0 0
        %686 = vmatpush2.bf16.msra.mxu0 0
        %687 = vmatprep.subr.bf16.mxu0 0
        %688 = vmatpush2.bf16.msra.mxu0 0
        %689 = vmatprep.subr.bf16.mxu0 0
        %690 = vmatpush2.bf16.msra.mxu0 0
        %691 = vmatprep.subr.bf16.mxu0 0
        %692 = vmatpush2.bf16.msra.mxu0 0
        %693 = vmatprep.mubr.bf16.mxu0 0
        %694 = vmatmul.mubr.bf16.gmra.mxu0 %v589
        %v695 = vpop.f32.mrf.mxu0
        %v696 = vadd.f32 %v611, %v695
        %v697 = vpop.f32.mrf.mxu0
        %v698 = vpop.f32.mrf.mxu0
        %v699 = vadd.f32 %v611, %v698
        %v700 = vpop.f32.mrf.mxu0
        %701 = vdwg.mxu0
        %p702 = scmp.lt.s32.totalorder %s18, 1
        %v703 = vmax.f32 %v696, 0.0
        %v704 = vmax.f32 %v699, 0.0
        %s705 = scalar_select %p702, 1, 0
        %v706 = vstv %s705
        %vm707 = vcmp.eq.s32.totalorder %v706, 1
        %v708 = vsel %vm707, %v703, %v696
        %v709 = vsel %vm707, %v704, %v699
        %710 = vst [vmem:[#allocation2] sm:$0xff] %v708
        %711 = vst [vmem:[#allocation2 + $0x8] sm:$0xff] %v709
        %p712 = scmp.eq.s32.totalorder %s18, 1
        // Predicated region
        $region49: #{_encoder_forward.1} parent=43 // pred_check
          %p713 = pneg %p712
        $region50: #{_encoder_forward.1} parent=43 // pred_check_branch
          %715 = sbr.rel (%p713) target = $region52
        $region51: #{_encoder_forward.1} parent=43 // pred_region
          %v716 = vld [vmem:[#allocation2] sm:$0xff]
          %v717 = vld [vmem:[#allocation2 + $0x8] sm:$0xff]
          %718 = vst [vmem:[#allocation3] sm:$0xff] %v716
          %719 = vst [vmem:[#allocation3 + $0x8] sm:$0xff] %v717
        $region52: #{_encoder_forward.1} parent=43 // pred_fallthru
          _
        // Predicated region
        $region53: #{_encoder_forward.1} parent=43 // pred_check
          %p720 = pneg %p167
        $region54: #{_encoder_forward.1} parent=43 // pred_check_branch
          %722 = sbr.rel (%p720) target = $region56
        $region55: #{_encoder_forward.1} parent=43 // pred_region
          %s724 = ssub.s32 256, 256
          %725 = vsyncadd [#allocation4], %s724
          %s726 = sshll.u32 [#allocation3], 4
          %s727 = int_to_ptr.vmem [resolvable:$true] %s726
          %732 = dma.vmem_to_hbm [thread:$0]  %s727, 256, %s6, [#allocation4], 128, 128, 8
        $region56: #{_encoder_forward.1} parent=43 // pred_fallthru
          _
        // Predicated region
        $region57: #{_encoder_forward.1} parent=43 // pred_check
          %p733 = pneg %p167
        $region58: #{_encoder_forward.1} parent=43 // pred_check_branch
          %735 = sbr.rel (%p733) target = $region60
        $region59: #{_encoder_forward.1} parent=43 // pred_region
          %736 = dma.done [#allocation4], 256
        $region60: #{_encoder_forward.1} parent=43 // pred_fallthru
          _
      $region44: #{_encoder_forward.1} parent=5 // pred_fallthru
        _
      %p737 = scmp.le.s32.totalorder 2, %s13
      // Predicated region
      $region61: #{_encoder_forward.1} parent=5 // pred_check
        %p738 = pneg %p737
      $region62: #{_encoder_forward.1} parent=5 // pred_check_branch
        %740 = sbr.rel (%p738) target = $region64
      $region63: #{_encoder_forward.1} parent=5 // pred_region
        %s741 = ssub.s32 %s13, 2
      $region64: #{_encoder_forward.1} parent=5 // pred_fallthru
        _
    $region6: #{_encoder_forward.1} parent=1 // loop_footer
      %s17 = sadd.s32 1, %s13
    $region7: #{_encoder_forward.1} parent=1 // loop_footer_branch
      %12 = sbr.rel target = $region3
    $region8: #{_encoder_forward.1} parent=1 // loop_exit
      _
    %742 = vsyncpa [#allocation4], 1
    %s743 = scalar_lea.sflag [#allocation4], 1
    %744 = vsyncpa %s743, 1

</llo_original>
